<compile_context>
chip_gen: v6e
topology: v6e:2x2x1
jax: 0.10.0
libtpu: 0.0.40
codegen_flags: <defaults>
</compile_context>

<pallas_src>
import jax
import jax.numpy as jnp
from jax.experimental import pallas as pl
from jax.experimental.pallas import tpu as pltpu


def _affine_kernel(params_ref, x_ref, o_ref):
    # params_ref: scalar-prefetched SMEM (2,) fp32 -> [gain, bias].
    g = params_ref[0]
    b = params_ref[1]
    xf = x_ref[...].astype(jnp.float32)
    o_ref[...] = (xf * g + b).astype(o_ref.dtype)


def _round_up(a, b):
    return ((a + b - 1) // b) * b


def _choose_cols(total, cap=2048):
    """Pick a column width tn that divides `total` exactly (reshape is free).

    Prefer the largest multiple-of-128 divisor <= cap that still leaves >= 8
    rows (lane-dense, sublane-full tiles).  If total is not a multiple of 128
    (rare for ML shapes) fall back to the largest plain divisor: the last
    lane-tile gets masked stores, but the kernel stays single-pass (no pad,
    no slice).
    """
    mult128 = [c for c in range(128, cap + 1, 128) if total % c == 0]
    if mult128:
        good = [c for c in mult128 if total // c >= 8]
        return max(good) if good else max(mult128)
    divs = [c for c in range(1, min(total, cap) + 1) if total % c == 0]
    good = [c for c in divs if c >= 128 and total // c >= 8]
    # TODO(synk): huge prime-ish sizes degrade to a skinny slab here; a
    # manual-DMA tail kernel would keep full lane width in that corner case.
    return max(good) if good else max(divs)


def affine(x, gain, bias, *, target_tile_bytes=4 * 1024 * 1024, col_cap=2048):
    """Elementwise y = x * gain + bias with scalar gain/bias (any x shape)."""
    orig_shape = x.shape
    out_dtype = jnp.result_type(x.dtype, jnp.float32)  # PyTorch-style promotion
    total = x.size
    if total == 0:
        return jnp.zeros(orig_shape, out_dtype)

    # --- Exact-divisor 2-D view: no pad, no output slice. -------------------
    tn = _choose_cols(total, col_cap)
    rows = total // tn
    x2d = x.reshape(rows, tn)

    in_item = jnp.dtype(x.dtype).itemsize
    out_item = jnp.dtype(out_dtype).itemsize
    # Sublane granularity: 8 for 4-byte, 16 for 2-byte, 32 for 1-byte dtypes.
    sub = 8 * max(1, 4 // in_item)

    tm_target = max(sub, _round_up(max(1, target_tile_bytes // (tn * in_item)), sub))
    if rows > tm_target:
        tm_eff = tm_target
    else:
        # Small/medium tensor: still emit >= 2 grid steps when legal so both
        # v7x TensorCores run (no effect on single-TC v5e/v6e).
        half = _round_up(pl.cdiv(rows, 2), sub)
        tm_eff = half if half < rows else rows  # full-extent rows is always legal

    grid = (pl.cdiv(rows, tm_eff),)

    # Scalar parameters -> one prefetched SMEM array [gain, bias].
    params = jnp.stack([jnp.asarray(gain, jnp.float32).reshape(()),
                        jnp.asarray(bias, jnp.float32).reshape(())])

    # VMEM: double-buffered input + output tiles plus a little headroom.
    tile_in = tm_eff * tn * in_item
    tile_out = tm_eff * tn * out_item
    vmem_limit = int(min(2 * (tile_in + tile_out) + 4 * 1024 * 1024,
                         96 * 1024 * 1024))

    # TODO(synk): in a real model this scalar affine should be fused into the
    # neighbouring kernel's epilogue; a standalone pass is HBM-bound by
    # construction.  input_output_aliases could halve peak HBM footprint but
    # only pays off when the caller actually donates x (otherwise XLA inserts
    # a defensive copy), so it is intentionally not set here.
    out2d = pl.pallas_call(
        _affine_kernel,
        out_shape=jax.ShapeDtypeStruct((rows, tn), out_dtype),
        grid_spec=pltpu.PrefetchScalarGridSpec(
            num_scalar_prefetch=1,
            grid=grid,
            in_specs=[pl.BlockSpec((tm_eff, tn), lambda i, params: (i, 0))],
            out_specs=pl.BlockSpec((tm_eff, tn), lambda i, params: (i, 0)),
        ),
        compiler_params=pltpu.CompilerParams(
            dimension_semantics=("parallel",),
            vmem_limit_bytes=vmem_limit,
        ),
    )(params, x2d)

    return out2d.reshape(orig_shape)


if __name__ == "__main__":
    key = jax.random.PRNGKey(0)

    # Parameters matching Affine.__init__ (ones/zeros), perturbed
    # deterministically so the transform is non-trivial.
    gain = jnp.ones((1,), dtype=jnp.float32) * 1.5
    bias = jnp.zeros((1,), dtype=jnp.float32) + 0.25

    # Main check: small 4-D input (Affine is shape-agnostic elementwise).
    x = jax.random.normal(key, (2, 4, 16, 16), dtype=jnp.float32)
    out = jax.block_until_ready(affine(x, gain, bias))
    ref = x * gain[0] + bias[0]
    assert out.shape == ref.shape and out.dtype == ref.dtype
    assert jnp.allclose(out, ref, atol=1e-6, rtol=1e-6)

    # Secondary check: size not divisible by 1024 -> exercises the
    # exact-divisor (no pad / no slice) path.
    x2 = jax.random.normal(jax.random.PRNGKey(1), (2, 3, 64), dtype=jnp.float32)
    out2 = jax.block_until_ready(affine(x2, gain, bias))
    ref2 = x2 * gain[0] + bias[0]
    assert out2.shape == ref2.shape and out2.dtype == ref2.dtype
    assert jnp.allclose(out2, ref2, atol=1e-6, rtol=1e-6)

    print("KERNEL_OK")
</pallas_src>

<mosaic_0001>
module attributes {stable_mosaic.version = 11 : i64} {
  func.func @_affine_kernel(%arg0: i32, %arg1: memref<2xf32, #tpu.memory_space<smem>>, %arg2: memref<8x256xf32, #tpu.memory_space<vmem>>, %arg3: memref<8x256xf32, #tpu.memory_space<vmem>>) attributes {dimension_semantics = [#tpu.dimension_semantics<parallel>], iteration_bounds = array<i64: 1>, scalar_prefetch = 1 : i64, scratch_operands = 0 : i64, tpu.core_type = #tpu.core_type<tc>, window_params = [{transform_indices = @transform_0, window_bounds = array<i64: 8, 256>}, {transform_indices = @transform_1, window_bounds = array<i64: 8, 256>}]} {
    %c0 = arith.constant 0 : index
    %0 = memref.load %arg1[%c0] : memref<2xf32, #tpu.memory_space<smem>>
    %c1 = arith.constant 1 : index
    %1 = memref.load %arg1[%c1] : memref<2xf32, #tpu.memory_space<smem>>
    %c0_0 = arith.constant 0 : index
    %c0_1 = arith.constant 0 : index
    %2 = vector.load %arg2[%c0_0, %c0_1] : memref<8x256xf32, #tpu.memory_space<vmem>>, vector<8x256xf32>
    %3 = vector.broadcast %0 : f32 to vector<8x256xf32>
    %4 = arith.mulf %2, %3 : vector<8x256xf32>
    %5 = vector.broadcast %1 : f32 to vector<8x256xf32>
    %6 = arith.addf %4, %5 : vector<8x256xf32>
    %c0_2 = arith.constant 0 : index
    %c0_3 = arith.constant 0 : index
    %7 = vector.load %arg3[%c0_2, %c0_3] : memref<8x256xf32, #tpu.memory_space<vmem>>, vector<8x256xf32>
    tpu.vector_store %arg3[%c0_2, %c0_3], %6 {strides = array<i32>} : memref<8x256xf32, #tpu.memory_space<vmem>>, vector<8x256xf32>,
    return
  }
  func.func @transform_0(%arg0: i32, %arg1: memref<2xf32, #tpu.memory_space<smem>>) -> (i32, i32) {
    %c0_i32 = arith.constant 0 : i32
    %c0_i32_0 = arith.constant 0 : i32
    return %arg0, %c0_i32 : i32, i32
  }
  func.func @transform_1(%arg0: i32, %arg1: memref<2xf32, #tpu.memory_space<smem>>) -> (i32, i32) {
    %c0_i32 = arith.constant 0 : i32
    %c0_i32_0 = arith.constant 0 : i32
    return %arg0, %c0_i32 : i32, i32
  }
}

</mosaic_0001>

<llo_original>
// kernel: tpu_custom_call.1
$region0: #{tpu_custom_call.1}
  #allocation0 [shape = 'u32[]', space=smem, size = 0x4, offset = 0x4, fixed_abs, tag = 'smem constant byte address 0x4 - core index']
  #allocation1 [shape = 'u32[144,128]{1,0:T(1,128)}', space=vmem, size = 0x12000, scoped, tag = 'internal scratch']
  #allocation2 [shape = 's32[1]{0}', space=sflag, size = 0x4, scoped, tag = 'scoped memory for tpu_custom_call.1']
  #allocation3 [shape = 'u8[512]{0}', space=smem, size = 0x200, scoped, tag = 'prefetched SMEM operand 0']
  %s0 = inlined_call_operand.hbm [shape: f32[2], index: 0, kind: input, shape index: {}]
  %s1 = inlined_call_operand.hbm [shape: f32[8,256], index: 1, kind: input, shape index: {}]
  %s2 = inlined_call_operand.hbm [shape: f32[8,256], index: 2, kind: output, shape index: {}]
  %s3 = sld [smem:[#allocation0]]
  $region18: #{tpu_custom_call.1} parent=0
    _
  %s5 = ssub.s32 1, %s3
  %s6 = scalar_select 0, %s5, %s3
  %8 = dma.hbm_to_smem %s0, 16, [#allocation3], [#allocation2]
  %9 = dma.done [#allocation2], 16
  %10 = sfence
  $region1: #{tpu_custom_call.1} parent=0
    #allocation4 [shape = 'u8[8192]{0}', space=vmem, size = 0x2000, scoped, tag = 'input window, operand 1, single buffered']
    #allocation5 [shape = 's32[1]{0}', space=sflag, size = 0x4, scoped, tag = 'scoped memory for tpu_custom_call.1']
    #allocation6 [shape = 's32[1]{0}', space=sflag, size = 0x4, scoped, tag = 'scoped memory for tpu_custom_call.1']
    #allocation7 [shape = 'u8[8192]{0}', space=vmem, size = 0x2000, scoped, tag = 'output window, operand 0, single buffered']
    %11 = vsyncpa [#allocation5], 0
    %12 = vsyncpa [#allocation6], 0
    // Predicated region
    $region2: #{tpu_custom_call.1} parent=1 // pred_check
      _
    $region3: #{tpu_custom_call.1} parent=1 // pred_check_branch
      %14 = sbr.rel (0) target = $region5
    $region4: #{tpu_custom_call.1} parent=1 // pred_region
      %s16 = ssub.s32 256, 256
      %17 = vsyncadd [#allocation5], %s16
      %s19 = sshll.u32 [#allocation4], 4
      %s20 = int_to_ptr.vmem [resolvable:$true] %s19
      %22 = dma.hbm_to_vmem [thread:$0]  %s1, 256, %s20, [#allocation5]
    $region5: #{tpu_custom_call.1} parent=1 // pred_fallthru
      _
    // Predicated region
    $region6: #{tpu_custom_call.1} parent=1 // pred_check
      _
    $region7: #{tpu_custom_call.1} parent=1 // pred_check_branch
      %24 = sbr.rel (0) target = $region9
    $region8: #{tpu_custom_call.1} parent=1 // pred_region
      %25 = dma.done [#allocation5], 256
    $region9: #{tpu_custom_call.1} parent=1 // pred_fallthru
      _
    %s26 = sld [smem:[#allocation3]]
    %s27 = sld [smem:[#allocation3 + $0x1]]
    %v28 = vld [vmem:[#allocation4] sm:$0xff]
    %v29 = vld [vmem:[#allocation4 + $0x8] sm:$0xff]
    %v30 = vstv %s26
    %v31 = vmul.f32 %v28, %v30
    %v32 = vmul.f32 %v29, %v30
    %v33 = vstv %s27
    %v34 = vadd.f32 %v31, %v33
    %v35 = vadd.f32 %v32, %v33
    %36 = vst [vmem:[#allocation7] sm:$0xff] %v34
    %37 = vst [vmem:[#allocation7 + $0x8] sm:$0xff] %v35
    // Predicated region
    $region10: #{tpu_custom_call.1} parent=1 // pred_check
      _
    $region11: #{tpu_custom_call.1} parent=1 // pred_check_branch
      %39 = sbr.rel (0) target = $region13
    $region12: #{tpu_custom_call.1} parent=1 // pred_region
      %s41 = ssub.s32 256, 256
      %42 = vsyncadd [#allocation6], %s41
      %s44 = sshll.u32 [#allocation7], 4
      %s45 = int_to_ptr.vmem [resolvable:$true] %s44
      %47 = dma.vmem_to_hbm [thread:$0]  %s45, 256, %s2, [#allocation6]
    $region13: #{tpu_custom_call.1} parent=1 // pred_fallthru
      _
    // Predicated region
    $region14: #{tpu_custom_call.1} parent=1 // pred_check
      _
    $region15: #{tpu_custom_call.1} parent=1 // pred_check_branch
      %49 = sbr.rel (0) target = $region17
    $region16: #{tpu_custom_call.1} parent=1 // pred_region
      %50 = dma.done [#allocation6], 256
    $region17: #{tpu_custom_call.1} parent=1 // pred_fallthru
      _
    %51 = vsyncpa [#allocation5], 1
    %52 = vsyncpa [#allocation6], 1

</llo_original>
